<compile_context>
chip_gen: v5e
topology: v5e:2x2
jax: 0.10.0
libtpu: 0.0.40
codegen_flags: <defaults>
</compile_context>

<pallas_src>
import jax
import jax.numpy as jnp
from jax.experimental import pallas as pl
from jax.experimental.pallas import tpu as pltpu


def _roi_align_kernel(box_ind_ref, w2d_ref, feat_ref, out_ref):
    # box_ind_ref : (M,) int32 in SMEM (scalar prefetch, consumed by the feat index_map)
    # w2d_ref     : (1, CHW_pad, H*W)  fused kron(Wy, Wx) interpolation weights (this box)
    # feat_ref    : (1, H*W, C)        channel-last featuremap slab of image box_ind[m]
    # out_ref     : (1, CHW_pad, C)
    out_ref[0] = jnp.dot(w2d_ref[0], feat_ref[0],
                         preferred_element_type=jnp.float32)


def _interp_weights(lo, hi, crop_size, img_size):
    """Per-box 1-D bilinear interpolation matrices (M, crop_size, img_size).

    Validity (sample point inside the image) is folded directly into the
    weights, so out-of-image samples contribute exactly 0 to the matmul.
    Relies on exact float equality of floor() values — fine for image sizes
    well below 2^24.
    """
    idx = jnp.arange(crop_size, dtype=jnp.float32)
    if crop_size > 1:
        scale = (hi - lo) * float(img_size - 1) / float(crop_size - 1)          # (M,)
        coord = lo[:, None] * float(img_size - 1) + idx[None, :] * scale[:, None]
    else:
        coord = jnp.broadcast_to(0.5 * (lo + hi)[:, None] * float(img_size - 1),
                                 (lo.shape[0], crop_size))
    valid = (coord >= 0.0) & (coord <= float(img_size - 1))                      # (M, crop)
    top = jnp.floor(coord)
    lerp = coord - top
    grid = jnp.arange(img_size, dtype=jnp.float32)[None, None, :]
    w = ((grid == top[:, :, None]).astype(jnp.float32) * (1.0 - lerp[:, :, None]) +
         (grid == (top[:, :, None] + 1.0)).astype(jnp.float32) * lerp[:, :, None])
    w = w * valid[:, :, None].astype(jnp.float32)                                # (M, crop, img)
    return w, valid


def roi_align(featuremap, boxes, box_ind, crop_height, crop_width,
              extrapolation_value=0.0, transform_fpcoor=True):
    """Forward pass of RoIAlign (crop_and_resize). featuremap NCHW -> (M,C,CH,CW)."""
    N, C, H, W = featuremap.shape
    M = boxes.shape[0]
    HW = H * W
    CHW = crop_height * crop_width
    CHW_pad = max(8, -(-CHW // 8) * 8)          # sublane-align the fused crop axis

    boxes = boxes.astype(jnp.float32)
    x1, y1, x2, y2 = boxes[:, 0], boxes[:, 1], boxes[:, 2], boxes[:, 3]

    # NOTE: divides by (H-1)/(W-1) exactly as the PyTorch module does, so a
    # 1-pixel featuremap dimension is equally undefined here.
    if transform_fpcoor:
        spacing_w = (x2 - x1) / float(crop_width)
        spacing_h = (y2 - y1) / float(crop_height)
        nx0 = (x1 + spacing_w / 2 - 0.5) / float(W - 1)
        ny0 = (y1 + spacing_h / 2 - 0.5) / float(H - 1)
        nw = spacing_w * float(crop_width - 1) / float(W - 1)
        nh = spacing_h * float(crop_height - 1) / float(H - 1)
        by1, bx1, by2, bx2 = ny0, nx0, ny0 + nh, nx0 + nw
    else:
        by1, bx1 = y1 / float(H - 1), x1 / float(W - 1)
        by2, bx2 = y2 / float(H - 1), x2 / float(W - 1)

    wy, valid_y = _interp_weights(by1, by2, crop_height, H)      # (M, CH, H)
    wx, valid_x = _interp_weights(bx1, bx2, crop_width, W)       # (M, CW, W)

    # Fused separable weights: W2d[m, i*CW + j, y*W + x] = wy[m, i, y] * wx[m, j, x]
    w2d = jnp.einsum('miy,mjx->mijyx', wy, wx).reshape(M, CHW, HW)
    w2d = jnp.pad(w2d, ((0, 0), (0, CHW_pad - CHW), (0, 0)))     # (M, CHW_pad, HW)

    # Channel-last flattened featuremap (N, H*W, C): lane-dense K and output N dims.
    feat_flat = jnp.transpose(featuremap.astype(jnp.float32),
                              (0, 2, 3, 1)).reshape(N, HW, C)

    # Sort boxes by image index so consecutive grid steps reuse the featuremap
    # block (Pallas skips the HBM->VMEM copy when the block index is unchanged).
    box_ind = box_ind.astype(jnp.int32)
    order = jnp.argsort(box_ind)
    inv_order = jnp.argsort(order)
    box_ind_s = box_ind[order]
    w2d_s = w2d[order]

    # Explicit VMEM budget: double-buffered inputs + output, clamped below the
    # smallest physical VMEM (v7x 64 MiB).
    # TODO(synk): for FPN-scale featuremaps on v7x, tile the C / H*W axes (or keep the
    # featuremap in HBM with pl.ANY + manual row-sliced DMA) instead of one full slab.
    block_bytes = 4 * (HW * C + CHW_pad * HW + CHW_pad * C)
    vmem_limit = int(min(max(2 * block_bytes + (2 << 20), 32 << 20), 60 << 20))

    grid_spec = pltpu.PrefetchScalarGridSpec(
        num_scalar_prefetch=1,           # box_ind lands in SMEM, used by feat index_map
        grid=(M,),
        in_specs=[
            pl.BlockSpec((1, CHW_pad, HW), lambda m, bi: (m, 0, 0)),
            pl.BlockSpec((1, HW, C), lambda m, bi: (bi[m], 0, 0)),
        ],
        out_specs=pl.BlockSpec((1, CHW_pad, C), lambda m, bi: (m, 0, 0)),
    )

    out = pl.pallas_call(
        _roi_align_kernel,
        out_shape=jax.ShapeDtypeStruct((M, CHW_pad, C), jnp.float32),
        grid_spec=grid_spec,
        compiler_params=pltpu.CompilerParams(
            dimension_semantics=("parallel",),
            vmem_limit_bytes=vmem_limit),
    )(box_ind_s, w2d_s, feat_flat)

    out = out[inv_order, :CHW, :]                                # (M, CH*CW, C)
    out = out.reshape(M, crop_height, crop_width, C)
    out = jnp.transpose(out, (0, 3, 1, 2))                       # (M, C, CH, CW)

    if float(extrapolation_value) != 0.0:
        # Invalid samples got 0 from the zeroed weights; replace with the
        # requested extrapolation value.
        mask = (valid_y[:, :, None] & valid_x[:, None, :])[:, None]   # (M, 1, CH, CW)
        out = jnp.where(mask, out, jnp.float32(extrapolation_value))
    return out


def roi_align_ref(featuremap, boxes, box_ind, ch, cw, extrap=0.0):
    """Independent pure-JAX gather-based reference (assumes ch, cw > 1)."""
    N, C, H, W = featuremap.shape
    x1, y1, x2, y2 = (boxes[:, 0], boxes[:, 1], boxes[:, 2], boxes[:, 3])
    spacing_w = (x2 - x1) / float(cw)
    spacing_h = (y2 - y1) / float(ch)
    nx0 = (x1 + spacing_w / 2 - 0.5) / float(W - 1)
    ny0 = (y1 + spacing_h / 2 - 0.5) / float(H - 1)
    nx1 = nx0 + spacing_w * float(cw - 1) / float(W - 1)
    ny1 = ny0 + spacing_h * float(ch - 1) / float(H - 1)

    def one_box(b_ny0, b_nx0, b_ny1, b_nx1, ind):
        img = featuremap[ind]                                                 # (C, H, W)
        ys = b_ny0 * float(H - 1) + jnp.arange(ch, dtype=jnp.float32) * (
            (b_ny1 - b_ny0) * float(H - 1) / float(ch - 1))
        xs = b_nx0 * float(W - 1) + jnp.arange(cw, dtype=jnp.float32) * (
            (b_nx1 - b_nx0) * float(W - 1) / float(cw - 1))
        yv = (ys >= 0.0) & (ys <= float(H - 1))
        xv = (xs >= 0.0) & (xs <= float(W - 1))
        yt = jnp.floor(ys); yl = ys - yt
        xt = jnp.floor(xs); xl = xs - xt
        y0 = jnp.clip(yt, 0, H - 1).astype(jnp.int32)
        y1i = jnp.clip(yt + 1, 0, H - 1).astype(jnp.int32)
        x0 = jnp.clip(xt, 0, W - 1).astype(jnp.int32)
        x1i = jnp.clip(xt + 1, 0, W - 1).astype(jnp.int32)

        def gather(yi, xi):
            return img[:, yi[:, None], xi[None, :]]                           # (C, ch, cw)

        top = gather(y0, x0) * (1 - xl)[None, None, :] + gather(y0, x1i) * xl[None, None, :]
        bot = gather(y1i, x0) * (1 - xl)[None, None, :] + gather(y1i, x1i) * xl[None, None, :]
        val = top * (1 - yl)[None, :, None] + bot * yl[None, :, None]
        valid = (yv[:, None] & xv[None, :])[None]
        return jnp.where(valid, val, extrap)

    return jax.vmap(one_box)(ny0, nx0, ny1, nx1, box_ind)


if __name__ == "__main__":
    key = jax.random.PRNGKey(0)
    k1, k2, k3 = jax.random.split(key, 3)

    N, C, H, W = 2, 4, 16, 16
    M = 6
    CH, CW = 7, 7

    featuremap = jax.random.normal(k1, (N, C, H, W), dtype=jnp.float32)
    ctr = jax.random.uniform(k2, (M, 2), minval=4.0, maxval=11.0, dtype=jnp.float32)
    half = jax.random.uniform(k3, (M, 2), minval=1.5, maxval=3.5, dtype=jnp.float32)
    boxes = jnp.stack([ctr[:, 0] - half[:, 0], ctr[:, 1] - half[:, 1],
                       ctr[:, 0] + half[:, 0], ctr[:, 1] + half[:, 1]], axis=1)
    # One box hanging off the image edge to exercise extrapolation masking.
    boxes = boxes.at[0].set(jnp.array([-3.0, -2.0, 6.0, 5.0], dtype=jnp.float32))
    box_ind = jnp.array([0, 1, 0, 1, 0, 1], dtype=jnp.int32)

    out = roi_align(featuremap, boxes, box_ind, CH, CW,
                    extrapolation_value=0.0, transform_fpcoor=True)
    out = jax.block_until_ready(out)

    ref = roi_align_ref(featuremap, boxes, box_ind, CH, CW, extrap=0.0)
    assert out.shape == (M, C, CH, CW), out.shape
    # Tolerance reflects default MXU matmul precision (bf16 operands, f32
    # accumulation) per the perf review; bilinear interp stays well within it.
    max_err = float(jnp.max(jnp.abs(out - ref)))
    assert max_err < 5e-2, f"max_err={max_err}"
    print("KERNEL_OK")
</pallas_src>

<mosaic_0001>
module attributes {stable_mosaic.version = 11 : i64} {
  func.func @_roi_align_kernel(%arg0: i32, %arg1: memref<6xi32, #tpu.memory_space<smem>>, %arg2: memref<1x56x256xf32, #tpu.memory_space<vmem>>, %arg3: memref<1x256x4xf32, #tpu.memory_space<vmem>>, %arg4: memref<1x56x4xf32, #tpu.memory_space<vmem>>) attributes {dimension_semantics = [#tpu.dimension_semantics<parallel>], iteration_bounds = array<i64: 6>, scalar_prefetch = 1 : i64, scratch_operands = 0 : i64, tpu.core_type = #tpu.core_type<tc>, window_params = [{transform_indices = @transform_0, window_bounds = array<i64: 1, 56, 256>}, {transform_indices = @transform_1, window_bounds = array<i64: 1, 256, 4>}, {transform_indices = @transform_2, window_bounds = array<i64: 1, 56, 4>}]} {
    %c0 = arith.constant 0 : index
    %c0_0 = arith.constant 0 : index
    %c0_1 = arith.constant 0 : index
    %0 = vector.load %arg2[%c0, %c0_0, %c0_1] : memref<1x56x256xf32, #tpu.memory_space<vmem>>, vector<1x56x256xf32>
    %1 = vector.shape_cast %0 : vector<1x56x256xf32> to vector<56x256xf32>
    %c0_2 = arith.constant 0 : index
    %c0_3 = arith.constant 0 : index
    %c0_4 = arith.constant 0 : index
    %2 = vector.load %arg3[%c0_2, %c0_3, %c0_4] : memref<1x256x4xf32, #tpu.memory_space<vmem>>, vector<1x256x4xf32>
    %3 = vector.shape_cast %2 : vector<1x256x4xf32> to vector<256x4xf32>
    %cst = arith.constant dense<0.000000e+00> : vector<56x4xf32>
    %4 = tpu.matmul %1, %3, %cst {dimension_numbers = #tpu.dot_dimension_numbers<[1], [0], [0], [1], [0, 0, 1, 1], [], []>} : vector<56x256xf32>, vector<256x4xf32>, vector<56x4xf32> -> vector<56x4xf32>
    %c0_5 = arith.constant 0 : index
    %c0_6 = arith.constant 0 : index
    %c0_7 = arith.constant 0 : index
    %5 = vector.load %arg4[%c0_5, %c0_6, %c0_7] : memref<1x56x4xf32, #tpu.memory_space<vmem>>, vector<1x56x4xf32>
    %6 = vector.shape_cast %5 : vector<1x56x4xf32> to vector<56x4xf32>
    %7 = vector.shape_cast %4 : vector<56x4xf32> to vector<1x56x4xf32>
    tpu.vector_store %arg4[%c0_5, %c0_6, %c0_7], %7 {strides = array<i32>} : memref<1x56x4xf32, #tpu.memory_space<vmem>>, vector<1x56x4xf32>,
    return
  }
  func.func @transform_0(%arg0: i32, %arg1: memref<6xi32, #tpu.memory_space<smem>>) -> (i32, i32, i32) {
    %c0_i32 = arith.constant 0 : i32
    %c0_i32_0 = arith.constant 0 : i32
    %c0_i32_1 = arith.constant 0 : i32
    return %arg0, %c0_i32, %c0_i32_0 : i32, i32, i32
  }
  func.func @transform_1(%arg0: i32, %arg1: memref<6xi32, #tpu.memory_space<smem>>) -> (i32, i32, i32) {
    %0 = arith.index_cast %arg0 : i32 to index
    %1 = memref.load %arg1[%0] : memref<6xi32, #tpu.memory_space<smem>>
    %c0_i32 = arith.constant 0 : i32
    %c0_i32_0 = arith.constant 0 : i32
    %c0_i32_1 = arith.constant 0 : i32
    return %1, %c0_i32, %c0_i32_0 : i32, i32, i32
  }
  func.func @transform_2(%arg0: i32, %arg1: memref<6xi32, #tpu.memory_space<smem>>) -> (i32, i32, i32) {
    %c0_i32 = arith.constant 0 : i32
    %c0_i32_0 = arith.constant 0 : i32
    %c0_i32_1 = arith.constant 0 : i32
    return %arg0, %c0_i32, %c0_i32_0 : i32, i32, i32
  }
}

</mosaic_0001>

<llo_original>
// kernel: tpu_custom_call.1
$region0: #{tpu_custom_call.1}
  #allocation0 [shape = 'u32[]', space=smem, size = 0x4, offset = 0x4, fixed_abs, tag = 'smem constant byte address 0x4 - core index']
  #allocation1 [shape = 'u32[72,128]{1,0:T(1,128)}', space=vmem, size = 0x9000, scoped, tag = 'internal scratch']
  #allocation2 [shape = 's32[1]{0}', space=sflag, size = 0x4, scoped, tag = 'scoped memory for tpu_custom_call.1']
  #allocation3 [shape = 'u8[512]{0}', space=smem, size = 0x200, scoped, tag = 'prefetched SMEM operand 0']
  %s0 = inlined_call_operand.vmem [shape: s32[6], index: 0, kind: input, shape index: {}]
  %s1 = inlined_call_operand.hbm [shape: f32[6,56,256], index: 1, kind: input, shape index: {}]
  %s2 = inlined_call_operand.vmem [shape: f32[2,256,4], index: 2, kind: input, shape index: {}]
  %s3 = inlined_call_operand.vmem [shape: f32[6,56,4], index: 3, kind: output, shape index: {}]
  %s4 = sld [smem:[#allocation0]]
  $region45: #{tpu_custom_call.1} parent=0
    _
  %s6 = ssub.s32 1, %s4
  %s7 = scalar_select 0, %s6, %s4
  %s9 = sshll.u32 %s0, 4
  %s10 = int_to_ptr.vmem [resolvable:$true] %s9
  %12 = dma.vmem_to_smem %s10, 16, [#allocation3], [#allocation2]
  %14 = dma.done [#allocation2], 16
  %15 = sfence
  $region1: #{tpu_custom_call.1} parent=0
    #allocation4 [shape = 'u8[114688]{0}', space=vmem, size = 0x1c000, scoped, tag = 'input window, operand 1']
    #allocation5 [shape = 's32[2]{0}', space=sflag, size = 0x8, scoped, tag = 'scoped memory for tpu_custom_call.1']
    %16 = vsyncpa [#allocation5], 0
    %s17 = scalar_lea.sflag [#allocation5], 1
    %18 = vsyncpa %s17, 0
    loop: start=0, step=1, limit=8
    $region2: #{tpu_custom_call.1} parent=1 // loop_pre_header
      _
    $region3: #{tpu_custom_call.1} parent=1 // loop_header
      %s20 = sphi 0, %s24
      %p21 = scmp.ge.s32.totalorder %s20, 8
      %s30 = sphi 0, %s32
      %s33 = sphi 0, %s30
      %s34 = sphi 0, %s33
      %s50 = sphi 0, %s34
      %s58 = sphi 0, %s60
      %s61 = sphi 0, %s58
      %s62 = sphi 0, %s61
      %s78 = sphi 0, %s62
      %s84 = sphi 0, %s86
      %s87 = sphi 0, %s84
      %s88 = sphi 0, %s87
      %s104 = sphi 0, %s88
    $region4: #{tpu_custom_call.1} parent=1 // loop_header_branch
      %23 = sbr.rel (%p21) target = $region8
    $region5: #{tpu_custom_call.1} parent=1 // loop_body
      %s25 = ssub.s32 %s20, 1
      %s26 = ssub.s32 %s20, 2
      %s27 = sadd.s32 %s20, 1
      %s28 = ssub.s32 %s20, %s27
      %p29 = scmp.eq.s32.totalorder %s28, 0
      %s31 = sadd.s32 %s30, 1
      %s32 = scalar_select %p29, %s30, %s31
      %p35 = pneg %p29
      %p36 = scmp.eq.s32.totalorder %s20, 5
      %p37 = por %p35, %p36
      %p38 = scmp.ne.s32.totalorder %s30, %s33
      %p39 = scmp.eq.s32.totalorder %s20, 0
      %p40 = por %p38, %p39
      %p41 = scmp.ne.s32.totalorder %s30, %s33
      %p42 = scmp.eq.s32.totalorder %s25, 5
      %p43 = por %p41, %p42
      %p44 = scmp.ne.s32.totalorder %s33, %s34
      %p45 = scmp.eq.s32.totalorder %s25, 0
      %p46 = por %p44, %p45
      %p47 = scmp.ne.s32.totalorder %s33, %s34
      %p48 = scmp.eq.s32.totalorder %s26, 5
      %p49 = por %p47, %p48
      %p51 = scmp.ne.s32.totalorder %s34, %s50
      %p52 = scmp.eq.s32.totalorder %s26, 0
      %p53 = por %p51, %p52
      %s54 = sld [smem:[#allocation3 + %s20]]
      %s55 = sld [smem:[#allocation3 + %s27]]
      %s56 = ssub.s32 %s54, %s55
      %p57 = scmp.eq.s32.totalorder %s56, 0
      %s59 = sadd.s32 %s58, 1
      %s60 = scalar_select %p57, %s58, %s59
      %p63 = pneg %p57
      %p64 = scmp.eq.s32.totalorder %s20, 5
      %p65 = por %p63, %p64
      %p66 = scmp.ne.s32.totalorder %s58, %s61
      %p67 = scmp.eq.s32.totalorder %s20, 0
      %p68 = por %p66, %p67
      %p69 = scmp.ne.s32.totalorder %s58, %s61
      %p70 = scmp.eq.s32.totalorder %s25, 5
      %p71 = por %p69, %p70
      %p72 = scmp.ne.s32.totalorder %s61, %s62
      %p73 = scmp.eq.s32.totalorder %s25, 0
      %p74 = por %p72, %p73
      %p75 = scmp.ne.s32.totalorder %s61, %s62
      %p76 = scmp.eq.s32.totalorder %s26, 5
      %p77 = por %p75, %p76
      %p79 = scmp.ne.s32.totalorder %s62, %s78
      %p80 = scmp.eq.s32.totalorder %s26, 0
      %p81 = por %p79, %p80
      %s82 = ssub.s32 %s20, %s27
      %p83 = scmp.eq.s32.totalorder %s82, 0
      %s85 = sadd.s32 %s84, 1
      %s86 = scalar_select %p83, %s84, %s85
      %p89 = pneg %p83
      %p90 = scmp.eq.s32.totalorder %s20, 5
      %p91 = por %p89, %p90
      %p92 = scmp.ne.s32.totalorder %s84, %s87
      %p93 = scmp.eq.s32.totalorder %s20, 0
      %p94 = por %p92, %p93
      %p95 = scmp.ne.s32.totalorder %s84, %s87
      %p96 = scmp.eq.s32.totalorder %s25, 5
      %p97 = por %p95, %p96
      %p98 = scmp.ne.s32.totalorder %s87, %s88
      %p99 = scmp.eq.s32.totalorder %s25, 0
      %p100 = por %p98, %p99
      %p101 = scmp.ne.s32.totalorder %s87, %s88
      %p102 = scmp.eq.s32.totalorder %s26, 5
      %p103 = por %p101, %p102
      %p105 = scmp.ne.s32.totalorder %s88, %s104
      %p106 = scmp.eq.s32.totalorder %s26, 0
      %p107 = por %p105, %p106
      %p108 = scmp.le.s32.totalorder 1, %s20
      %p109 = scmp.lt.s32.totalorder %s20, 7
      %p110 = pnand %p108, %p109
      %p111 = pneg %p110
      // Predicated region
      $region9: #{tpu_custom_call.1} parent=5 // pred_check
        _
      $region10: #{tpu_custom_call.1} parent=5 // pred_check_branch
        %113 = sbr.rel (%p110) target = $region12
      $region11: #{tpu_custom_call.1} parent=5 // pred_region
        %s114 = ssub.s32 %s20, 1
      $region12: #{tpu_custom_call.1} parent=5 // pred_fallthru
        _
      %p115 = scmp.lt.s32.totalorder %s20, 6
      // Predicated region
      $region13: #{tpu_custom_call.1} parent=5 // pred_check
        %p116 = pneg %p115
      $region14: #{tpu_custom_call.1} parent=5 // pred_check_branch
        %118 = sbr.rel (%p116) target = $region16
      $region15: #{tpu_custom_call.1} parent=5 // pred_region
        // Predicated region
        $region17: #{tpu_custom_call.1} parent=15 // pred_check
          %p119 = pneg %p40
        $region18: #{tpu_custom_call.1} parent=15 // pred_check_branch
          %121 = sbr.rel (%p119) target = $region20
        $region19: #{tpu_custom_call.1} parent=15 // pred_region
          %s122 = sand.u32 %s30, 1
          %s123 = scalar_lea.sflag [#allocation5], %s122
          %s124 = sand.u32 %s30, 1
          %s125 = smul.addr %s124, 112
          %s126 = scalar_lea.vmem [#allocation4], %s125
          %128 = vsyncadd %s123, 0
          %s129 = smul.addr %s20, 14
          %s130 = smul.addr %s129, 8
          %s131 = scalar_lea.hbm %s1, %s130
          %s132 = sshll.u32 %s131, 4
          %s133 = int_to_ptr.hbm [resolvable:$true] %s132
          %s134 = sshll.u32 %s126, 4
          %s135 = int_to_ptr.vmem [resolvable:$true] %s134
          %140 = dma.hbm_to_vmem [thread:$0]  %s133, 1792, %s135, %s123, 256, 256, 16
        $region20: #{tpu_custom_call.1} parent=15 // pred_fallthru
          _
        // Predicated region
        $region21: #{tpu_custom_call.1} parent=15 // pred_check
          %p141 = pneg %p68
        $region22: #{tpu_custom_call.1} parent=15 // pred_check_branch
          %143 = sbr.rel (%p141) target = $region24
        $region23: #{tpu_custom_call.1} parent=15 // pred_region
          %s144 = sld [smem:[#allocation3 + %s20]]
          %p145 = scmp.lt.s32.totalorder %s144, 1
          %s146 = scalar_select %p145, %s144, 1
          %s147 = smul.addr %s146, 32
          %s148 = smul.addr %s147, 8
          %s149 = scalar_lea.vmem %s2, %s148
          %s150 = sld [smem:[#allocation3 + %s20]]
        $region24: #{tpu_custom_call.1} parent=15 // pred_fallthru
          _
      $region16: #{tpu_custom_call.1} parent=5 // pred_fallthru
        _
      %p151 = scmp.le.s32.totalorder 1, %s20
      %p152 = scmp.lt.s32.totalorder %s20, 7
      %p153 = pnand %p151, %p152
      %p154 = pneg %p153
      // Predicated region
      $region25: #{tpu_custom_call.1} parent=5 // pred_check
        _
      $region26: #{tpu_custom_call.1} parent=5 // pred_check_branch
        %156 = sbr.rel (%p153) target = $region28
      $region27: #{tpu_custom_call.1} parent=5 // pred_region
        %s157 = ssub.s32 %s20, 1
        %s158 = sand.u32 %s33, 1
        %s159 = scalar_lea.sflag [#allocation5], %s158
        %s160 = sand.u32 %s33, 1
        %s161 = smul.addr %s160, 112
        %s162 = scalar_lea.vmem [#allocation4], %s161
        // Predicated region
        $region29: #{tpu_custom_call.1} parent=27 // pred_check
          %p163 = pneg %p46
        $region30: #{tpu_custom_call.1} parent=27 // pred_check_branch
          %165 = sbr.rel (%p163) target = $region32
        $region31: #{tpu_custom_call.1} parent=27 // pred_region
          %167 = dma.done %s159, 1792
        $region32: #{tpu_custom_call.1} parent=27 // pred_fallthru
          _
        %s168 = sand.u32 %s33, 1
        %s169 = scalar_lea.sflag [#allocation5], %s168
        %s170 = sand.u32 %s33, 1
        %s171 = smul.addr %s170, 112
        %s172 = scalar_lea.vmem [#allocation4], %s171
        %p173 = pneg %p46
        %p174 = pneg %p43
        %s175 = sld [smem:[#allocation3 + %s25]]
        %p176 = scmp.lt.s32.totalorder %s175, 1
        %s177 = scalar_select %p176, %s175, 1
        %s178 = smul.addr %s177, 32
        %s179 = smul.addr %s178, 8
        %s180 = scalar_lea.vmem %s2, %s179
        %p181 = pneg %p74
        %p182 = pneg %p71
        %p183 = pneg %p100
        %p184 = pneg %p97
        %p185 = scmp.lt.s32.totalorder %s25, 5
        %s186 = scalar_select %p185, %s25, 5
        %s187 = smul.addr %s186, 7
        %s188 = smul.addr %s187, 8
        %s189 = scalar_lea.vmem %s3, %s188
        %s190 = sld [smem:[#allocation3 + %s25]]
        %p191 = scmp.lt.s32.totalorder %s190, 1
        %s192 = scalar_select %p191, %s190, 1
        %s193 = smul.addr %s192, 32
        %s194 = smul.addr %s193, 8
        %s195 = scalar_lea.vmem %s2, %s194
        %s196 = sld [smem:[#allocation3 + %s25]]
        %p197 = scmp.lt.s32.totalorder %s25, 5
        %s198 = scalar_select %p197, %s25, 5
        %s199 = smul.addr %s198, 7
        %s200 = smul.addr %s199, 8
        %s201 = scalar_lea.vmem %s3, %s200
        %v202 = vld [vmem:[%s162] sm:$0xff]
        %v203 = vld [vmem:[%s162 + $0x8] sm:$0xff]
        %v204 = vld [vmem:[%s162 + $0x10] sm:$0xff]
        %v205 = vld [vmem:[%s162 + $0x18] sm:$0xff]
        %v206 = vld [vmem:[%s162 + $0x20] sm:$0xff]
        %v207 = vld [vmem:[%s162 + $0x28] sm:$0xff]
        %v208 = vld [vmem:[%s162 + $0x30] sm:$0xff]
        %v209 = vld [vmem:[%s162 + $0x38] sm:$0xff]
        %v210 = vld [vmem:[%s162 + $0x40] sm:$0xff]
        %v211 = vld [vmem:[%s162 + $0x48] sm:$0xff]
        %v212 = vld [vmem:[%s162 + $0x50] sm:$0xff]
        %v213 = vld [vmem:[%s162 + $0x58] sm:$0xff]
        %v214 = vld [vmem:[%s162 + $0x60] sm:$0xff]
        %v215 = vld [vmem:[%s162 + $0x68] sm:$0xff]
        %v216 = vld [vmem:[%s195] sm:$0xff]
        %v217 = vld [vmem:[%s195 + $0x8] sm:$0xff]
        %v218 = vld [vmem:[%s195 + $0x10] sm:$0xff]
        %v219 = vld [vmem:[%s195 + $0x18] sm:$0xff]
        %v220 = vld [vmem:[%s195 + $0x20] sm:$0xff]
        %v221 = vld [vmem:[%s195 + $0x28] sm:$0xff]
        %v222 = vld [vmem:[%s195 + $0x30] sm:$0xff]
        %v223 = vld [vmem:[%s195 + $0x38] sm:$0xff]
        %v224 = vld [vmem:[%s195 + $0x40] sm:$0xff]
        %v225 = vld [vmem:[%s195 + $0x48] sm:$0xff]
        %v226 = vld [vmem:[%s195 + $0x50] sm:$0xff]
        %v227 = vld [vmem:[%s195 + $0x58] sm:$0xff]
        %v228 = vld [vmem:[%s195 + $0x60] sm:$0xff]
        %v229 = vld [vmem:[%s195 + $0x68] sm:$0xff]
        %v230 = vld [vmem:[%s195 + $0x70] sm:$0xff]
        %v231 = vld [vmem:[%s195 + $0x78] sm:$0xff]
        %v232 = vld [vmem:[%s195 + $0x80] sm:$0xff]
        %v233 = vld [vmem:[%s195 + $0x88] sm:$0xff]
        %v234 = vld [vmem:[%s195 + $0x90] sm:$0xff]
        %v235 = vld [vmem:[%s195 + $0x98] sm:$0xff]
        %v236 = vld [vmem:[%s195 + $0xa0] sm:$0xff]
        %v237 = vld [vmem:[%s195 + $0xa8] sm:$0xff]
        %v238 = vld [vmem:[%s195 + $0xb0] sm:$0xff]
        %v239 = vld [vmem:[%s195 + $0xb8] sm:$0xff]
        %v240 = vld [vmem:[%s195 + $0xc0] sm:$0xff]
        %v241 = vld [vmem:[%s195 + $0xc8] sm:$0xff]
        %v242 = vld [vmem:[%s195 + $0xd0] sm:$0xff]
        %v243 = vld [vmem:[%s195 + $0xd8] sm:$0xff]
        %v244 = vld [vmem:[%s195 + $0xe0] sm:$0xff]
        %v245 = vld [vmem:[%s195 + $0xe8] sm:$0xff]
        %v246 = vld [vmem:[%s195 + $0xf0] sm:$0xff]
        %v247 = vld [vmem:[%s195 + $0xf8] sm:$0xff]
        %248 = vmatpush.msra.mxu0 %v231
        %249 = vmatpush.msra.mxu0 %v230
        %250 = vmatpush.msra.mxu0 %v229
        %251 = vmatpush.msra.mxu0 %v228
        %252 = vmatpush.msra.mxu0 %v227
        %253 = vmatpush.msra.mxu0 %v226
        %254 = vmatpush.msra.mxu0 %v225
        %255 = vmatpush.msra.mxu0 %v224
        %256 = vmatpush.msra.mxu0 %v223
        %257 = vmatpush.msra.mxu0 %v222
        %258 = vmatpush.msra.mxu0 %v221
        %259 = vmatpush.msra.mxu0 %v220
        %260 = vmatpush.msra.mxu0 %v219
        %261 = vmatpush.msra.mxu0 %v218
        %262 = vmatpush.msra.mxu0 %v217
        %263 = vmatpush.msra.mxu0 %v216
        %264 = vmatmul.f32.gmra.mxu0 %v202
        %v265 = vpop.f32.mrf.mxu0
        %v266 = vadd.f32 0.0, %v265
        %267 = vmatmul.f32.gmra.mxu0 %v204
        %v268 = vpop.f32.mrf.mxu0
        %v269 = vadd.f32 0.0, %v268
        %270 = vmatmul.f32.gmra.mxu0 %v206
        %v271 = vpop.f32.mrf.mxu0
        %v272 = vadd.f32 0.0, %v271
        %273 = vmatmul.f32.gmra.mxu0 %v208
        %v274 = vpop.f32.mrf.mxu0
        %v275 = vadd.f32 0.0, %v274
        %276 = vmatmul.f32.gmra.mxu0 %v210
        %v277 = vpop.f32.mrf.mxu0
        %v278 = vadd.f32 0.0, %v277
        %279 = vmatmul.f32.gmra.mxu0 %v212
        %v280 = vpop.f32.mrf.mxu0
        %v281 = vadd.f32 0.0, %v280
        %282 = vmatmul.f32.gmra.mxu0 %v214
        %v283 = vpop.f32.mrf.mxu0
        %v284 = vadd.f32 0.0, %v283
        %285 = vdwg.mxu0
        %286 = vmatpush.msra.mxu0 %v247
        %287 = vmatpush.msra.mxu0 %v246
        %288 = vmatpush.msra.mxu0 %v245
        %289 = vmatpush.msra.mxu0 %v244
        %290 = vmatpush.msra.mxu0 %v243
        %291 = vmatpush.msra.mxu0 %v242
        %292 = vmatpush.msra.mxu0 %v241
        %293 = vmatpush.msra.mxu0 %v240
        %294 = vmatpush.msra.mxu0 %v239
        %295 = vmatpush.msra.mxu0 %v238
        %296 = vmatpush.msra.mxu0 %v237
        %297 = vmatpush.msra.mxu0 %v236
        %298 = vmatpush.msra.mxu0 %v235
        %299 = vmatpush.msra.mxu0 %v234
        %300 = vmatpush.msra.mxu0 %v233
        %301 = vmatpush.msra.mxu0 %v232
        %302 = vmatmul.f32.gmra.mxu0 %v203
        %v303 = vpop.f32.mrf.mxu0
        %v304 = vadd.f32 %v266, %v303
        %305 = vmatmul.f32.gmra.mxu0 %v205
        %v306 = vpop.f32.mrf.mxu0
        %v307 = vadd.f32 %v269, %v306
        %308 = vmatmul.f32.gmra.mxu0 %v207
        %v309 = vpop.f32.mrf.mxu0
        %v310 = vadd.f32 %v272, %v309
        %311 = vmatmul.f32.gmra.mxu0 %v209
        %v312 = vpop.f32.mrf.mxu0
        %v313 = vadd.f32 %v275, %v312
        %314 = vmatmul.f32.gmra.mxu0 %v211
        %v315 = vpop.f32.mrf.mxu0
        %v316 = vadd.f32 %v278, %v315
        %317 = vmatmul.f32.gmra.mxu0 %v213
        %v318 = vpop.f32.mrf.mxu0
        %v319 = vadd.f32 %v281, %v318
        %320 = vmatmul.f32.gmra.mxu0 %v215
        %v321 = vpop.f32.mrf.mxu0
        %v322 = vadd.f32 %v284, %v321
        %323 = vdwg.mxu0
        %vm324 = vcmask 31744
        %325 = vst.msk [vmem:[%s201] sm:$0xff] %vm324, %v304
        %326 = vst.msk [vmem:[%s201 + $0x8] sm:$0xff] %vm324, %v307
        %327 = vst.msk [vmem:[%s201 + $0x10] sm:$0xff] %vm324, %v310
        %328 = vst.msk [vmem:[%s201 + $0x18] sm:$0xff] %vm324, %v313
        %329 = vst.msk [vmem:[%s201 + $0x20] sm:$0xff] %vm324, %v316
        %330 = vst.msk [vmem:[%s201 + $0x28] sm:$0xff] %vm324, %v319
        %331 = vst.msk [vmem:[%s201 + $0x30] sm:$0xff] %vm324, %v322
        %p332 = scmp.lt.s32.totalorder %s25, 5
        %s333 = scalar_select %p332, %s25, 5
        %s334 = smul.addr %s333, 7
        %s335 = smul.addr %s334, 8
        %s336 = scalar_lea.vmem %s3, %s335
        // Predicated region
        $region33: #{tpu_custom_call.1} parent=27 // pred_check
          %p337 = pneg %p97
        $region34: #{tpu_custom_call.1} parent=27 // pred_check_branch
          %339 = sbr.rel (%p337) target = $region36
        $region35: #{tpu_custom_call.1} parent=27 // pred_region
          _
        $region36: #{tpu_custom_call.1} parent=27 // pred_fallthru
          _
      $region28: #{tpu_custom_call.1} parent=5 // pred_fallthru
        _
      %p340 = scmp.le.s32.totalorder 2, %s20
      // Predicated region
      $region37: #{tpu_custom_call.1} parent=5 // pred_check
        %p341 = pneg %p340
      $region38: #{tpu_custom_call.1} parent=5 // pred_check_branch
        %343 = sbr.rel (%p341) target = $region40
      $region39: #{tpu_custom_call.1} parent=5 // pred_region
        %s344 = ssub.s32 %s20, 2
        // Predicated region
        $region41: #{tpu_custom_call.1} parent=39 // pred_check
          %p345 = pneg %p103
        $region42: #{tpu_custom_call.1} parent=39 // pred_check_branch
          %347 = sbr.rel (%p345) target = $region44
        $region43: #{tpu_custom_call.1} parent=39 // pred_region
          %p348 = scmp.lt.s32.totalorder %s26, 5
          %s349 = scalar_select %p348, %s26, 5
          %s350 = smul.addr %s349, 7
          %s351 = smul.addr %s350, 8
          %s352 = scalar_lea.vmem %s3, %s351
        $region44: #{tpu_custom_call.1} parent=39 // pred_fallthru
          _
      $region40: #{tpu_custom_call.1} parent=5 // pred_fallthru
        _
    $region6: #{tpu_custom_call.1} parent=1 // loop_footer
      %s24 = sadd.s32 1, %s20
    $region7: #{tpu_custom_call.1} parent=1 // loop_footer_branch
      %19 = sbr.rel target = $region3
    $region8: #{tpu_custom_call.1} parent=1 // loop_exit
      _
    %353 = vsyncpa [#allocation5], 1
    %s354 = scalar_lea.sflag [#allocation5], 1
    %355 = vsyncpa %s354, 1

</llo_original>
